<compile_context>
chip_gen: v7x
topology: tpu7x:2x2x1
jax: 0.10.0
libtpu: 0.0.40
codegen_flags: <defaults>
</compile_context>

<pallas_src>
import math

import jax
import jax.numpy as jnp
from jax.experimental import pallas as pl
from jax.experimental.pallas import tpu as pltpu


def autopad(k, p=None, d=1):
    """Pad to 'same' shape outputs (mirrors the PyTorch helper)."""
    if d > 1:
        k = d * (k - 1) + 1 if isinstance(k, int) else [d * (x - 1) + 1 for x in k]
    if p is None:
        p = k // 2 if isinstance(k, int) else [x // 2 for x in k]
    return p


def _round_up(x, m):
    return ((x + m - 1) // m) * m


def _vmem_limit_bytes():
    """Per-generation VMEM budget: half of physical (64 MiB v5e/v6e, 32 MiB v7x)."""
    try:
        cap = pltpu.get_tpu_info().vmem_capacity_bytes
    except Exception:
        cap = 64 * 1024 * 1024  # conservative fallback (v7x per-core physical)
    return max(32 * 1024 * 1024, cap // 2)


def _silu(y):
    # SiLU via tanh: sigmoid(y) = 0.5*tanh(0.5*y) + 0.5 — one EUP op + VPU fma.
    return y * (0.5 * jnp.tanh(0.5 * y) + 0.5)


# ----------------------------------------------------------------------------
# Kernels
# ----------------------------------------------------------------------------
def _pointwise_kernel(w_ref, x_ref, shift_ref, o_ref, acc_ref):
    # w_ref:     (tn, tkc)   BN-scale-folded weights
    # x_ref:     (tkc, tl)   channels on sublanes, length on lanes
    # shift_ref: (tn, 1)     folded BN shift
    # o_ref:     (tn, tl)    lane-dense output tile
    # acc_ref:   (tn, tl)    f32 accumulator (resident across the Kc axis)
    kc = pl.program_id(3)

    @pl.when(kc == 0)
    def _():
        acc_ref[...] = jnp.zeros_like(acc_ref)

    acc_ref[...] += jnp.dot(w_ref[...], x_ref[...],
                            preferred_element_type=jnp.float32)

    @pl.when(kc == pl.num_programs(3) - 1)
    def _():
        y = acc_ref[...] + shift_ref[...]
        o_ref[...] = _silu(y).astype(o_ref.dtype)


def _make_halo_kernel(k, s, d, c1, tl):
    """k>1 / strided conv: haloed activation window + in-kernel tap accumulation."""

    def kernel(w_ref, x_hbm, shift_ref, o_ref, xwin_ref, sem):
        b = pl.program_id(0)
        l = pl.program_id(1)
        n = pl.program_id(2)

        # The haloed window is shared by every output-channel tile of this
        # (batch, length-tile): fetch it only once, at n == 0.
        @pl.when(n == 0)
        def _():
            start = pl.multiple_of(l * (tl * s), 128)
            cp = pltpu.make_async_copy(
                x_hbm.at[b, :, pl.ds(start, xwin_ref.shape[1])], xwin_ref, sem)
            cp.start()
            cp.wait()

        acc = jnp.zeros(o_ref.shape, jnp.float32)
        for t in range(k):                               # static, unrolled tap loop
            w_t = w_ref[:, pl.ds(t * c1, c1)]            # (tn, C1) == weight[:, :, t]
            if s == 1:
                x_t = xwin_ref[:, pl.ds(t * d, tl)]      # (C1, tl)
            else:
                x_t = xwin_ref[:, pl.ds(t * d, tl, stride=s)]
            acc = acc + jnp.dot(w_t, x_t, preferred_element_type=jnp.float32)

        y = acc + shift_ref[...]
        o_ref[...] = _silu(y).astype(o_ref.dtype)

    return kernel


# ----------------------------------------------------------------------------
# Tile selection
# ----------------------------------------------------------------------------
def _pick_length_tile(Lout, target_tl):
    """Lane tile (multiple of 128); keep the pointwise path zero-copy if possible."""
    target = max(128, _round_up(target_tl, 128))
    if Lout % 128 == 0:
        # largest multiple-of-128 divisor of Lout that is <= target (no padding)
        m = Lout // 128
        best = 1
        for g in range(1, m + 1):
            if m % g == 0 and 128 * g <= target:
                best = g
        return 128 * best, Lout
    tl = min(target, _round_up(Lout, 128))
    return tl, _round_up(Lout, tl)


def _tn_options(C2):
    opts = []
    t = _round_up(C2, 8)
    while True:
        opts.append(t)
        if t <= 8:
            break
        t = max(8, _round_up(t // 2, 8))
    return opts


def _pick_channel_tiles(C2, Kc, tl, w_itemsize, x_itemsize, o_itemsize, budget):
    """Pick (tn, C2p, tkc, Kcp) so double-buffered blocks + accumulator fit VMEM."""

    def fits(tn, tkc):
        blocks = 2 * (tn * tkc * w_itemsize        # weight (double-buffered)
                      + tkc * tl * x_itemsize      # activation
                      + tn * tl * o_itemsize       # output
                      + tn * 4)                    # shift
        scratch = 3 * tn * tl * 4                  # f32 accumulator + epilogue temps
        return blocks + scratch <= budget

    # Only split very deep contractions over the Kc grid axis.
    kc_opts = [Kc] if Kc <= 2048 else [1024, 512, 256, Kc]
    tn_opts = _tn_options(C2)                      # largest first: tn == C2p ⇒ weight DMA'd once

    for tkc in kc_opts:
        for tn in tn_opts:
            if fits(tn, tkc):
                return tn, _round_up(C2, tn), tkc, _round_up(Kc, tkc)
    tn = 8
    tkc = kc_opts[0] if Kc > 2048 else Kc
    return tn, _round_up(C2, tn), tkc, _round_up(Kc, tkc)


def _pick_halo_tn(C2, Kc, C1, tl, win, w_itemsize, x_itemsize, o_itemsize, budget):
    def fits(tn):
        blocks = 2 * (tn * Kc * w_itemsize + tn * tl * o_itemsize + tn * 4)
        scratch = C1 * win * x_itemsize + 3 * tn * tl * 4
        return blocks + scratch <= budget

    for tn in _tn_options(C2):
        if fits(tn) or tn <= 8:
            return tn, _round_up(C2, tn)
    return 8, _round_up(C2, 8)


# ----------------------------------------------------------------------------
# Wrapper
# ----------------------------------------------------------------------------
def conv_bn_silu(x, weight, gamma, beta, running_mean, running_var,
                 *, k=1, s=1, p=None, d=1, eps=1e-5,
                 target_tl=1024, compute_dtype=None, out_dtype=None):
    """Forward of Conv(c1, c2, k, s, p, g=1, d, act=True) in eval mode.

    x:      (B, C1, L)   weight: (C2, C1, k)   ->  (B, C2, Lout)

    compute_dtype: e.g. jnp.bfloat16 to halve HBM traffic / hit MXU bf16 peak;
      accumulation, BN shift and SiLU stay in f32.
    """
    # TODO(synk): groups != 1 and non-SiLU activation modules are not supported.
    assert isinstance(k, int) and isinstance(s, int) and isinstance(d, int), \
        "only scalar k/s/d supported"
    B, C1, L = x.shape
    C2 = weight.shape[0]
    assert weight.shape == (C2, C1, k), "groups != 1 not supported"
    pad = autopad(k, p, d)
    assert isinstance(pad, int), "only scalar padding supported"
    Lout = (L + 2 * pad - d * (k - 1) - 1) // s + 1

    if out_dtype is None:
        out_dtype = x.dtype
    if compute_dtype is not None:
        x = x.astype(compute_dtype)                    # cast before any pad/expansion

    # Fold BatchNorm1d running stats: y = conv(x) * inv + (beta - mean * inv)
    inv = (gamma / jnp.sqrt(running_var + eps)).astype(jnp.float32)        # (C2,)
    shift = (beta - running_mean * inv)[:, None].astype(jnp.float32)       # (C2, 1)

    budget = _vmem_limit_bytes()
    fit_budget = int(0.9 * budget)
    xb = x.dtype.itemsize
    ob = jnp.dtype(out_dtype).itemsize

    tl, Lp = _pick_length_tile(Lout, target_tl)

    # ---------------- pointwise (k == 1, s == 1): zero-copy input ----------------
    if k == 1 and s == 1:
        Kc = C1
        w2d = weight.reshape(C2, C1).astype(jnp.float32) * inv[:, None]
        if compute_dtype is not None:
            w2d = w2d.astype(compute_dtype)
        wb = w2d.dtype.itemsize
        tn, C2p, tkc, Kcp = _pick_channel_tiles(C2, Kc, tl, wb, xb, ob, fit_budget)

        x_col = x
        if Lp != Lout:
            x_col = jnp.pad(x_col, ((0, 0), (0, 0), (0, Lp - Lout)))
        if Kcp != Kc:
            x_col = jnp.pad(x_col, ((0, 0), (0, Kcp - Kc), (0, 0)))
        if C2p != C2 or Kcp != Kc:
            w2d = jnp.pad(w2d, ((0, C2p - C2), (0, Kcp - Kc)))
        shift_p = jnp.pad(shift, ((0, C2p - C2), (0, 0))) if C2p != C2 else shift

        x_reads = 1 if Kcp == tkc else C2p // tn
        w_reads = 1 if (tn == C2p and tkc == Kcp) else B * (Lp // tl)
        cost = pl.CostEstimate(
            flops=2 * B * C2p * Kcp * Lp,
            transcendentals=B * C2p * Lp,
            bytes_accessed=(x_reads * x_col.size * xb
                            + w_reads * w2d.size * wb
                            + B * C2p * Lp * ob))

        out = pl.pallas_call(
            _pointwise_kernel,
            out_shape=jax.ShapeDtypeStruct((B, C2p, Lp), out_dtype),
            grid_spec=pltpu.PrefetchScalarGridSpec(
                num_scalar_prefetch=0,
                # n (output-channel tiles) inner of l, Kc innermost: x tile is
                # not re-DMA'd across n; weight/shift are DMA'd once when
                # tn == C2p and tkc == Kcp.
                grid=(B, Lp // tl, C2p // tn, Kcp // tkc),
                in_specs=[
                    pl.BlockSpec((tn, tkc), lambda b, l, n, kc: (n, kc)),
                    pl.BlockSpec((None, tkc, tl), lambda b, l, n, kc: (b, kc, l)),
                    pl.BlockSpec((tn, 1), lambda b, l, n, kc: (n, 0)),
                ],
                out_specs=pl.BlockSpec((None, tn, tl),
                                       lambda b, l, n, kc: (b, n, l)),
                scratch_shapes=[pltpu.VMEM((tn, tl), jnp.float32)],
            ),
            compiler_params=pltpu.CompilerParams(
                dimension_semantics=("parallel", "parallel", "parallel", "arbitrary"),
                vmem_limit_bytes=budget),
            cost_estimate=cost,
        )(w2d, x_col, shift_p)
        return out[:, :C2, :Lout]

    # ---------------- k > 1 (or strided): haloed windows, no HBM im2col ----------------
    Kc = C1 * k
    # taps-major weight layout: column block [t*C1, (t+1)*C1) == weight[:, :, t]
    w2d = (jnp.transpose(weight, (0, 2, 1)).reshape(C2, Kc).astype(jnp.float32)
           * inv[:, None])
    if compute_dtype is not None:
        w2d = w2d.astype(compute_dtype)
    wb = w2d.dtype.itemsize

    win = _round_up((tl - 1) * s + (k - 1) * d + 1, 128)   # haloed window length
    tn, C2p = _pick_halo_tn(C2, Kc, C1, tl, win, wb, xb, ob, fit_budget)

    lin_needed = (Lp // tl - 1) * tl * s + win
    right = max(lin_needed - (L + pad), 0)
    x_pad = jnp.pad(x, ((0, 0), (0, 0), (pad, right)))     # single pad of x, no k-fold copy
    if C2p != C2:
        w2d = jnp.pad(w2d, ((0, C2p - C2), (0, 0)))
        shift = jnp.pad(shift, ((0, C2p - C2), (0, 0)))

    w_reads = 1 if tn == C2p else B * (Lp // tl)
    cost = pl.CostEstimate(
        flops=2 * B * C2p * Kc * Lp,
        transcendentals=B * C2p * Lp,
        bytes_accessed=(x_pad.size * xb + w_reads * w2d.size * wb
                        + B * C2p * Lp * ob))

    out = pl.pallas_call(
        _make_halo_kernel(k, s, d, C1, tl),
        out_shape=jax.ShapeDtypeStruct((B, C2p, Lp), out_dtype),
        grid_spec=pltpu.PrefetchScalarGridSpec(
            num_scalar_prefetch=0,
            grid=(B, Lp // tl, C2p // tn),
            in_specs=[
                pl.BlockSpec((tn, Kc), lambda b, l, n: (n, 0)),
                pl.BlockSpec(memory_space=pl.ANY),          # x stays in HBM
                pl.BlockSpec((tn, 1), lambda b, l, n: (n, 0)),
            ],
            out_specs=pl.BlockSpec((None, tn, tl), lambda b, l, n: (b, n, l)),
            scratch_shapes=[
                pltpu.VMEM((C1, win), x_pad.dtype),
                pltpu.SemaphoreType.DMA,
            ],
        ),
        compiler_params=pltpu.CompilerParams(
            # n must stay sequential ("arbitrary"): it reuses the window
            # fetched at n == 0.
            dimension_semantics=("parallel", "parallel", "arbitrary"),
            vmem_limit_bytes=budget),
        cost_estimate=cost,
    )(w2d, x_pad, shift)
    return out[:, :C2, :Lout]


# ----------------------------------------------------------------------------
# Reference & self-test
# ----------------------------------------------------------------------------
def reference(x, weight, gamma, beta, running_mean, running_var,
              *, k=1, s=1, p=None, d=1, eps=1e-5):
    """Pure-JAX reference (lax conv + BN + SiLU)."""
    pad = autopad(k, p, d)
    y = jax.lax.conv_general_dilated(
        x, weight, window_strides=(s,), padding=[(pad, pad)],
        rhs_dilation=(d,), dimension_numbers=("NCH", "OIH", "NCH"))
    inv = gamma / jnp.sqrt(running_var + eps)
    y = y * inv[None, :, None] + (beta - running_mean * inv)[None, :, None]
    return y * jax.nn.sigmoid(y)


if __name__ == "__main__":
    key = jax.random.PRNGKey(0)
    k1, k2, k3, k4 = jax.random.split(key, 4)

    def init_params(kw, c1, c2, kk):
        fan_in = c1 * kk
        bound = 1.0 / math.sqrt(fan_in)
        weight = jax.random.uniform(kw, (c2, c1, kk), minval=-bound, maxval=bound,
                                    dtype=jnp.float32)
        gamma = jnp.ones((c2,), jnp.float32)          # bn.weight
        beta = jnp.zeros((c2,), jnp.float32)          # bn.bias
        mean = jnp.zeros((c2,), jnp.float32)
        var = jnp.ones((c2,), jnp.float32)
        return weight, gamma, beta, mean, var

    # Case 1: default Conv(c1=4, c2=8, k=1) on (2, 4, 16) — pointwise path.
    B, C1, C2, L, K = 2, 4, 8, 16, 1
    x = jax.random.normal(k1, (B, C1, L), dtype=jnp.float32)
    params = init_params(k2, C1, C2, K)
    out = jax.block_until_ready(conv_bn_silu(x, *params, k=K))
    ref = reference(x, *params, k=K)
    assert out.shape == (B, C2, L), out.shape
    assert jnp.allclose(out, ref, atol=1e-5, rtol=1e-5)

    # Case 2: Conv(c1=4, c2=8, k=3, s=1) on (2, 4, 64) — haloed k>1 path.
    B, C1, C2, L, K = 2, 4, 8, 64, 3
    x = jax.random.normal(k3, (B, C1, L), dtype=jnp.float32)
    params = init_params(k4, C1, C2, K)
    out = jax.block_until_ready(conv_bn_silu(x, *params, k=K))
    ref = reference(x, *params, k=K)
    assert out.shape == (B, C2, L), out.shape
    assert jnp.allclose(out, ref, atol=1e-5, rtol=1e-5)

    print("KERNEL_OK")
</pallas_src>

<mosaic_0001>
module attributes {stable_mosaic.version = 11 : i64} {
  func.func @_pointwise_kernel(%arg0: i32, %arg1: i32, %arg2: i32, %arg3: i32, %arg4: memref<8x4xf32, #tpu.memory_space<vmem>>, %arg5: memref<1x4x128xf32, #tpu.memory_space<vmem>>, %arg6: memref<8x1xf32, #tpu.memory_space<vmem>>, %arg7: memref<1x8x128xf32, #tpu.memory_space<vmem>>, %arg8: memref<8x128xf32, #tpu.memory_space<vmem>>) attributes {dimension_semantics = [#tpu.dimension_semantics<parallel>, #tpu.dimension_semantics<parallel>, #tpu.dimension_semantics<parallel>, #tpu.dimension_semantics<arbitrary>], iteration_bounds = array<i64: 2, 1, 1, 1>, scalar_prefetch = 0 : i64, scratch_operands = 1 : i64, tpu.core_type = #tpu.core_type<tc>, window_params = [{transform_indices = @transform_0, window_bounds = array<i64: 8, 4>}, {transform_indices = @transform_1, window_bounds = array<i64: 1, 4, 128>}, {transform_indices = @transform_2, window_bounds = array<i64: 8, 1>}, {transform_indices = @transform_3, window_bounds = array<i64: 1, 8, 128>}]} {
    %c0_i32 = arith.constant 0 : i32
    %0 = arith.cmpi eq, %arg3, %c0_i32 : i32
    %1 = arith.extui %0 : i1 to i32
    %c0_i32_0 = arith.constant 0 : i32
    %2 = arith.cmpi ne, %1, %c0_i32_0 : i32
    scf.if %2 {
      %cst_11 = arith.constant 0.000000e+00 : f32
      %13 = vector.broadcast %cst_11 : f32 to vector<8x128xf32>
      %c0_12 = arith.constant 0 : index
      %c0_13 = arith.constant 0 : index
      %14 = vector.load %arg8[%c0_12, %c0_13] : memref<8x128xf32, #tpu.memory_space<vmem>>, vector<8x128xf32>
      tpu.vector_store %arg8[%c0_12, %c0_13], %13 {strides = array<i32>} : memref<8x128xf32, #tpu.memory_space<vmem>>, vector<8x128xf32>,
    } else {
    }
    %c0 = arith.constant 0 : index
    %c0_1 = arith.constant 0 : index
    %3 = vector.load %arg8[%c0, %c0_1] : memref<8x128xf32, #tpu.memory_space<vmem>>, vector<8x128xf32>
    %c0_2 = arith.constant 0 : index
    %c0_3 = arith.constant 0 : index
    %4 = vector.load %arg4[%c0_2, %c0_3] : memref<8x4xf32, #tpu.memory_space<vmem>>, vector<8x4xf32>
    %c0_4 = arith.constant 0 : index
    %c0_5 = arith.constant 0 : index
    %c0_6 = arith.constant 0 : index
    %5 = vector.load %arg5[%c0_4, %c0_5, %c0_6] : memref<1x4x128xf32, #tpu.memory_space<vmem>>, vector<1x4x128xf32>
    %6 = vector.shape_cast %5 : vector<1x4x128xf32> to vector<4x128xf32>
    %cst = arith.constant dense<0.000000e+00> : vector<8x128xf32>
    %7 = tpu.matmul %4, %6, %cst {dimension_numbers = #tpu.dot_dimension_numbers<[1], [0], [0], [1], [0, 0, 1, 1], [], []>} : vector<8x4xf32>, vector<4x128xf32>, vector<8x128xf32> -> vector<8x128xf32>
    %8 = arith.addf %3, %7 : vector<8x128xf32>
    %c0_7 = arith.constant 0 : index
    %c0_8 = arith.constant 0 : index
    %9 = vector.load %arg8[%c0_7, %c0_8] : memref<8x128xf32, #tpu.memory_space<vmem>>, vector<8x128xf32>
    tpu.vector_store %arg8[%c0_7, %c0_8], %8 {strides = array<i32>} : memref<8x128xf32, #tpu.memory_space<vmem>>, vector<8x128xf32>,
    %c0_i32_9 = arith.constant 0 : i32
    %10 = arith.cmpi eq, %arg3, %c0_i32_9 : i32
    %11 = arith.extui %10 : i1 to i32
    %c0_i32_10 = arith.constant 0 : i32
    %12 = arith.cmpi ne, %11, %c0_i32_10 : i32
    scf.if %12 {
      %c0_11 = arith.constant 0 : index
      %c0_12 = arith.constant 0 : index
      %13 = vector.load %arg8[%c0_11, %c0_12] : memref<8x128xf32, #tpu.memory_space<vmem>>, vector<8x128xf32>
      %c0_13 = arith.constant 0 : index
      %c0_14 = arith.constant 0 : index
      %14 = vector.load %arg6[%c0_13, %c0_14] : memref<8x1xf32, #tpu.memory_space<vmem>>, vector<8x1xf32>
      %15 = vector.broadcast %14 : vector<8x1xf32> to vector<8x128xf32>
      %16 = arith.addf %13, %15 : vector<8x128xf32>
      %cst_15 = arith.constant 5.000000e-01 : f32
      %17 = vector.broadcast %cst_15 : f32 to vector<8x128xf32>
      %18 = arith.mulf %17, %16 : vector<8x128xf32>
      %19 = math.tanh %18 : vector<8x128xf32>
      %cst_16 = arith.constant 5.000000e-01 : f32
      %20 = vector.broadcast %cst_16 : f32 to vector<8x128xf32>
      %21 = arith.mulf %20, %19 : vector<8x128xf32>
      %cst_17 = arith.constant 5.000000e-01 : f32
      %22 = vector.broadcast %cst_17 : f32 to vector<8x128xf32>
      %23 = arith.addf %21, %22 : vector<8x128xf32>
      %24 = arith.mulf %16, %23 : vector<8x128xf32>
      %c0_18 = arith.constant 0 : index
      %c0_19 = arith.constant 0 : index
      %c0_20 = arith.constant 0 : index
      %25 = vector.load %arg7[%c0_18, %c0_19, %c0_20] : memref<1x8x128xf32, #tpu.memory_space<vmem>>, vector<1x8x128xf32>
      %26 = vector.shape_cast %25 : vector<1x8x128xf32> to vector<8x128xf32>
      %27 = vector.shape_cast %24 : vector<8x128xf32> to vector<1x8x128xf32>
      tpu.vector_store %arg7[%c0_18, %c0_19, %c0_20], %27 {strides = array<i32>} : memref<1x8x128xf32, #tpu.memory_space<vmem>>, vector<1x8x128xf32>,
    } else {
    }
    return
  }
  func.func @transform_0(%arg0: i32, %arg1: i32, %arg2: i32, %arg3: i32) -> (i32, i32) {
    %c0_i32 = arith.constant 0 : i32
    return %arg2, %arg3 : i32, i32
  }
  func.func @transform_1(%arg0: i32, %arg1: i32, %arg2: i32, %arg3: i32) -> (i32, i32, i32) {
    %c0_i32 = arith.constant 0 : i32
    return %arg0, %arg3, %arg1 : i32, i32, i32
  }
  func.func @transform_2(%arg0: i32, %arg1: i32, %arg2: i32, %arg3: i32) -> (i32, i32) {
    %c0_i32 = arith.constant 0 : i32
    %c0_i32_0 = arith.constant 0 : i32
    return %arg2, %c0_i32 : i32, i32
  }
  func.func @transform_3(%arg0: i32, %arg1: i32, %arg2: i32, %arg3: i32) -> (i32, i32, i32) {
    %c0_i32 = arith.constant 0 : i32
    return %arg0, %arg2, %arg1 : i32, i32, i32
  }
}

</mosaic_0001>

<llo_original>
// kernel: tpu_custom_call.1
$region0: #{tpu_custom_call.1}
  #allocation0 [shape = 'u32[]', space=smem, size = 0x4, offset = 0x4, fixed_abs, tag = 'smem constant byte address 0x4 - core index']
  #allocation1 [shape = 'u32[144,128]{1,0:T(1,128)}', space=vmem, size = 0x12000, scoped, tag = 'internal scratch']
  #allocation2 [shape = 'f32[8,128]{1,0:T(8,128)}', space=vmem, size = 0x1000, scoped, tag = 'scratch operand']
  %s0 = inlined_call_operand.vmem [shape: f32[8,4], index: 0, kind: input, shape index: {}]
  %s1 = inlined_call_operand.vmem [shape: f32[2,4,128], index: 1, kind: input, shape index: {}]
  %s2 = inlined_call_operand.vmem [shape: f32[8,1], index: 2, kind: input, shape index: {}]
  %s3 = inlined_call_operand.hbm [shape: f32[2,8,128], index: 3, kind: output, shape index: {}]
  %s4 = sld [smem:[#allocation0]]
  $region53: #{tpu_custom_call.1} parent=0
    _
  %s6 = ssub.s32 1, %s4
  %s7 = scalar_select 0, %s6, %s4
  $region1: #{tpu_custom_call.1} parent=0
    #allocation3 [shape = 'u8[8192]{0}', space=vmem, size = 0x2000, scoped, tag = 'output window, operand 0']
    #allocation4 [shape = 's32[2]{0}', space=sflag, size = 0x8, scoped, tag = 'scoped memory for tpu_custom_call.1']
    %8 = vsyncpa [#allocation4], 0
    %s9 = scalar_lea.sflag [#allocation4], 1
    %10 = vsyncpa %s9, 0
    loop: start=0, step=1, limit=4
    $region2: #{tpu_custom_call.1} parent=1 // loop_pre_header
      _
    $region3: #{tpu_custom_call.1} parent=1 // loop_header
      %s12 = sphi 0, %s16
      %p13 = scmp.ge.s32.totalorder %s12, 4
      %s19 = sphi 0, %s45
      %s20 = sphi 0, %s41
      %s21 = sphi 0, %s37
      %s22 = sphi 0, %s33
      %s23 = sphi 0, %s19
      %s24 = sphi 0, %s20
      %s25 = sphi 0, %s21
      %s26 = sphi 0, %s22
      %s27 = sphi 0, %s23
      %s28 = sphi 0, %s24
      %s29 = sphi 0, %s25
      %s30 = sphi 0, %s26
      %s50 = sphi 0, %s52
      %s53 = sphi 0, %s50
      %s54 = sphi 0, %s53
      %s70 = sphi 0, %s54
      %s80 = sphi 0, %s82
      %s83 = sphi 0, %s80
      %s84 = sphi 0, %s83
      %s100 = sphi 0, %s84
      %s106 = sphi 0, %s108
      %s109 = sphi 0, %s106
      %s110 = sphi 0, %s109
      %s126 = sphi 0, %s110
      %s136 = sphi 0, %s138
      %s139 = sphi 0, %s136
      %s140 = sphi 0, %s139
      %s156 = sphi 0, %s140
    $region4: #{tpu_custom_call.1} parent=1 // loop_header_branch
      %15 = sbr.rel (%p13) target = $region8
    $region5: #{tpu_custom_call.1} parent=1 // loop_body
      %s17 = ssub.s32 %s12, 1
      %s18 = ssub.s32 %s12, 2
      %s31 = sadd.s32 1, %s22
      %p32 = scmp.ge.s32.totalorder %s31, 1
      %s33 = scalar_select %p32, 0, %s31
      %s34 = sadd.s32 1, %s21
      %s35 = scalar_select %p32, %s34, %s21
      %p36 = scmp.ge.s32.totalorder %s35, 1
      %s37 = scalar_select %p36, 0, %s35
      %s38 = sadd.s32 1, %s20
      %s39 = scalar_select %p36, %s38, %s20
      %p40 = scmp.ge.s32.totalorder %s39, 1
      %s41 = scalar_select %p40, 0, %s39
      %s42 = sadd.s32 1, %s19
      %s43 = scalar_select %p40, %s42, %s19
      %p44 = scmp.ge.s32.totalorder %s43, 2
      %s45 = scalar_select %p44, 0, %s43
      %s46 = ssub.s32 %s21, %s37
      %s47 = ssub.s32 %s22, %s33
      %s48 = sor.u32 %s46, %s47
      %p49 = scmp.eq.s32.totalorder %s48, 0
      %s51 = sadd.s32 %s50, 1
      %s52 = scalar_select %p49, %s50, %s51
      %p55 = pneg %p49
      %p56 = scmp.eq.s32.totalorder %s12, 1
      %p57 = por %p55, %p56
      %p58 = scmp.ne.s32.totalorder %s50, %s53
      %p59 = scmp.eq.s32.totalorder %s12, 0
      %p60 = por %p58, %p59
      %p61 = scmp.ne.s32.totalorder %s50, %s53
      %p62 = scmp.eq.s32.totalorder %s17, 1
      %p63 = por %p61, %p62
      %p64 = scmp.ne.s32.totalorder %s53, %s54
      %p65 = scmp.eq.s32.totalorder %s17, 0
      %p66 = por %p64, %p65
      %p67 = scmp.ne.s32.totalorder %s53, %s54
      %p68 = scmp.eq.s32.totalorder %s18, 1
      %p69 = por %p67, %p68
      %p71 = scmp.ne.s32.totalorder %s54, %s70
      %p72 = scmp.eq.s32.totalorder %s18, 0
      %p73 = por %p71, %p72
      %s74 = ssub.s32 %s19, %s45
      %s75 = ssub.s32 %s22, %s33
      %s76 = sor.u32 %s74, %s75
      %s77 = ssub.s32 %s20, %s41
      %s78 = sor.u32 %s76, %s77
      %p79 = scmp.eq.s32.totalorder %s78, 0
      %s81 = sadd.s32 %s80, 1
      %s82 = scalar_select %p79, %s80, %s81
      %p85 = pneg %p79
      %p86 = scmp.eq.s32.totalorder %s12, 1
      %p87 = por %p85, %p86
      %p88 = scmp.ne.s32.totalorder %s80, %s83
      %p89 = scmp.eq.s32.totalorder %s12, 0
      %p90 = por %p88, %p89
      %p91 = scmp.ne.s32.totalorder %s80, %s83
      %p92 = scmp.eq.s32.totalorder %s17, 1
      %p93 = por %p91, %p92
      %p94 = scmp.ne.s32.totalorder %s83, %s84
      %p95 = scmp.eq.s32.totalorder %s17, 0
      %p96 = por %p94, %p95
      %p97 = scmp.ne.s32.totalorder %s83, %s84
      %p98 = scmp.eq.s32.totalorder %s18, 1
      %p99 = por %p97, %p98
      %p101 = scmp.ne.s32.totalorder %s84, %s100
      %p102 = scmp.eq.s32.totalorder %s18, 0
      %p103 = por %p101, %p102
      %s104 = ssub.s32 %s21, %s37
      %p105 = scmp.eq.s32.totalorder %s104, 0
      %s107 = sadd.s32 %s106, 1
      %s108 = scalar_select %p105, %s106, %s107
      %p111 = pneg %p105
      %p112 = scmp.eq.s32.totalorder %s12, 1
      %p113 = por %p111, %p112
      %p114 = scmp.ne.s32.totalorder %s106, %s109
      %p115 = scmp.eq.s32.totalorder %s12, 0
      %p116 = por %p114, %p115
      %p117 = scmp.ne.s32.totalorder %s106, %s109
      %p118 = scmp.eq.s32.totalorder %s17, 1
      %p119 = por %p117, %p118
      %p120 = scmp.ne.s32.totalorder %s109, %s110
      %p121 = scmp.eq.s32.totalorder %s17, 0
      %p122 = por %p120, %p121
      %p123 = scmp.ne.s32.totalorder %s109, %s110
      %p124 = scmp.eq.s32.totalorder %s18, 1
      %p125 = por %p123, %p124
      %p127 = scmp.ne.s32.totalorder %s110, %s126
      %p128 = scmp.eq.s32.totalorder %s18, 0
      %p129 = por %p127, %p128
      %s130 = ssub.s32 %s19, %s45
      %s131 = ssub.s32 %s21, %s37
      %s132 = sor.u32 %s130, %s131
      %s133 = ssub.s32 %s20, %s41
      %s134 = sor.u32 %s132, %s133
      %p135 = scmp.eq.s32.totalorder %s134, 0
      %s137 = sadd.s32 %s136, 1
      %s138 = scalar_select %p135, %s136, %s137
      %p141 = pneg %p135
      %p142 = scmp.eq.s32.totalorder %s12, 1
      %p143 = por %p141, %p142
      %p144 = scmp.ne.s32.totalorder %s136, %s139
      %p145 = scmp.eq.s32.totalorder %s12, 0
      %p146 = por %p144, %p145
      %p147 = scmp.ne.s32.totalorder %s136, %s139
      %p148 = scmp.eq.s32.totalorder %s17, 1
      %p149 = por %p147, %p148
      %p150 = scmp.ne.s32.totalorder %s139, %s140
      %p151 = scmp.eq.s32.totalorder %s17, 0
      %p152 = por %p150, %p151
      %p153 = scmp.ne.s32.totalorder %s139, %s140
      %p154 = scmp.eq.s32.totalorder %s18, 1
      %p155 = por %p153, %p154
      %p157 = scmp.ne.s32.totalorder %s140, %s156
      %p158 = scmp.eq.s32.totalorder %s18, 0
      %p159 = por %p157, %p158
      %p160 = scmp.le.s32.totalorder 1, %s12
      %p161 = scmp.lt.s32.totalorder %s12, 3
      %p162 = pnand %p160, %p161
      %p163 = pneg %p162
      // Predicated region
      $region9: #{tpu_custom_call.1} parent=5 // pred_check
        _
      $region10: #{tpu_custom_call.1} parent=5 // pred_check_branch
        %165 = sbr.rel (%p162) target = $region12
      $region11: #{tpu_custom_call.1} parent=5 // pred_region
        %s166 = ssub.s32 %s12, 1
        // Predicated region
        $region13: #{tpu_custom_call.1} parent=11 // pred_check
          %p167 = pneg %p66
        $region14: #{tpu_custom_call.1} parent=11 // pred_check_branch
          %169 = sbr.rel (%p167) target = $region16
        $region15: #{tpu_custom_call.1} parent=11 // pred_region
          %p170 = scmp.lt.s32.totalorder %s25, 0
          %s171 = scalar_select %p170, %s25, 0
          %p172 = scmp.lt.s32.totalorder %s26, 0
          %s173 = scalar_select %p172, %s26, 0
          %s174 = sadd.s32 %s173, %s171
          %s175 = smul.addr %s174, 8
          %s176 = scalar_lea.vmem %s0, %s175
        $region16: #{tpu_custom_call.1} parent=11 // pred_fallthru
          _
        // Predicated region
        $region17: #{tpu_custom_call.1} parent=11 // pred_check
          %p177 = pneg %p122
        $region18: #{tpu_custom_call.1} parent=11 // pred_check_branch
          %179 = sbr.rel (%p177) target = $region20
        $region19: #{tpu_custom_call.1} parent=11 // pred_region
          %p180 = scmp.lt.s32.totalorder %s25, 0
          %s181 = scalar_select %p180, %s25, 0
          %s182 = smul.addr %s181, 8
          %s183 = scalar_lea.vmem %s2, %s182
        $region20: #{tpu_custom_call.1} parent=11 // pred_fallthru
          _
      $region12: #{tpu_custom_call.1} parent=5 // pred_fallthru
        _
      %p184 = scmp.lt.s32.totalorder %s12, 2
      // Predicated region
      $region21: #{tpu_custom_call.1} parent=5 // pred_check
        %p185 = pneg %p184
      $region22: #{tpu_custom_call.1} parent=5 // pred_check_branch
        %187 = sbr.rel (%p185) target = $region24
      $region23: #{tpu_custom_call.1} parent=5 // pred_region
        // Predicated region
        $region25: #{tpu_custom_call.1} parent=23 // pred_check
          %p188 = pneg %p90
        $region26: #{tpu_custom_call.1} parent=23 // pred_check_branch
          %190 = sbr.rel (%p188) target = $region28
        $region27: #{tpu_custom_call.1} parent=23 // pred_region
          %p191 = scmp.lt.s32.totalorder %s19, 1
          %s192 = scalar_select %p191, %s19, 1
          %p193 = scmp.lt.s32.totalorder %s22, 0
          %s194 = scalar_select %p193, %s22, 0
          %p195 = scmp.lt.s32.totalorder %s20, 0
          %s196 = scalar_select %p195, %s20, 0
          %s197 = sadd.s32 %s196, %s194
          %s198 = sadd.s32 %s197, %s192
          %s199 = smul.addr %s198, 4
          %s200 = scalar_lea.vmem %s1, %s199
        $region28: #{tpu_custom_call.1} parent=23 // pred_fallthru
          _
      $region24: #{tpu_custom_call.1} parent=5 // pred_fallthru
        _
      %p201 = scmp.le.s32.totalorder 1, %s12
      %p202 = scmp.lt.s32.totalorder %s12, 3
      %p203 = pnand %p201, %p202
      %p204 = pneg %p203
      // Predicated region
      $region29: #{tpu_custom_call.1} parent=5 // pred_check
        _
      $region30: #{tpu_custom_call.1} parent=5 // pred_check_branch
        %206 = sbr.rel (%p203) target = $region32
      $region31: #{tpu_custom_call.1} parent=5 // pred_region
        %s207 = ssub.s32 %s12, 1
        %p208 = scmp.lt.s32.totalorder %s25, 0
        %s209 = scalar_select %p208, %s25, 0
        %p210 = scmp.lt.s32.totalorder %s26, 0
        %s211 = scalar_select %p210, %s26, 0
        %s212 = sadd.s32 %s211, %s209
        %s213 = smul.addr %s212, 8
        %s214 = scalar_lea.vmem %s0, %s213
        %p215 = pneg %p66
        %p216 = pneg %p63
        %p217 = scmp.lt.s32.totalorder %s23, 1
        %s218 = scalar_select %p217, %s23, 1
        %p219 = scmp.lt.s32.totalorder %s26, 0
        %s220 = scalar_select %p219, %s26, 0
        %p221 = scmp.lt.s32.totalorder %s24, 0
        %s222 = scalar_select %p221, %s24, 0
        %s223 = sadd.s32 %s222, %s220
        %s224 = sadd.s32 %s223, %s218
        %s225 = smul.addr %s224, 4
        %s226 = scalar_lea.vmem %s1, %s225
        %p227 = pneg %p96
        %p228 = pneg %p93
        %p229 = scmp.lt.s32.totalorder %s25, 0
        %s230 = scalar_select %p229, %s25, 0
        %s231 = smul.addr %s230, 8
        %s232 = scalar_lea.vmem %s2, %s231
        %p233 = pneg %p122
        %p234 = pneg %p119
        %p235 = pneg %p152
        %p236 = pneg %p149
        %s237 = sand.u32 %s139, 1
        %s238 = scalar_lea.sflag [#allocation4], %s237
        %s239 = sand.u32 %s139, 1
        %s240 = smul.addr %s239, 8
        %s241 = scalar_lea.vmem [#allocation3], %s240
        %p242 = scmp.lt.s32.totalorder %s25, 0
        %s243 = scalar_select %p242, %s25, 0
        %p244 = scmp.lt.s32.totalorder %s26, 0
        %s245 = scalar_select %p244, %s26, 0
        %s246 = sadd.s32 %s245, %s243
        %s247 = smul.addr %s246, 8
        %s248 = scalar_lea.vmem %s0, %s247
        %p249 = scmp.lt.s32.totalorder %s23, 1
        %s250 = scalar_select %p249, %s23, 1
        %p251 = scmp.lt.s32.totalorder %s26, 0
        %s252 = scalar_select %p251, %s26, 0
        %p253 = scmp.lt.s32.totalorder %s24, 0
        %s254 = scalar_select %p253, %s24, 0
        %s255 = sadd.s32 %s254, %s252
        %s256 = sadd.s32 %s255, %s250
        %s257 = smul.addr %s256, 4
        %s258 = scalar_lea.vmem %s1, %s257
        %p259 = scmp.lt.s32.totalorder %s25, 0
        %s260 = scalar_select %p259, %s25, 0
        %s261 = smul.addr %s260, 8
        %s262 = scalar_lea.vmem %s2, %s261
        %p263 = scmp.eq.s32.totalorder %s26, 0
        // Predicated region
        $region33: #{tpu_custom_call.1} parent=31 // pred_check
          %p264 = pneg %p263
        $region34: #{tpu_custom_call.1} parent=31 // pred_check_branch
          %266 = sbr.rel (%p264) target = $region36
        $region35: #{tpu_custom_call.1} parent=31 // pred_region
          %267 = vst [vmem:[#allocation2] sm:$0xff] 0.0
        $region36: #{tpu_custom_call.1} parent=31 // pred_fallthru
          _
        %v268 = vld [vmem:[#allocation2] sm:$0xff]
        %v269 = vld [vmem:[%s248] sm:$0xff]
        %v270 = vld [vmem:[%s258] sm:$0xf]
        %vm271 = vcmask 31744
        %v273 = vsel %vm271, %v269, 0
        %vm275 = vcmask 1043456
        %v277 = vsel %vm275, %v270, 0
        %279 = vmatprep.subr.mxu0 0.0
        %280 = vmatpush1.msra.mxu0 %v277
        %281 = vmatprep.subr.mxu0 0.0
        %282 = vmatpush1.msra.mxu0 0.0
        %283 = vmatprep.subr.mxu0 0.0
        %284 = vmatpush1.msra.mxu0 0.0
        %285 = vmatprep.subr.mxu0 0.0
        %286 = vmatpush1.msra.mxu0 0.0
        %287 = vmatprep.subr.mxu0 0.0
        %288 = vmatpush1.msra.mxu0 0.0
        %289 = vmatprep.subr.mxu0 0.0
        %290 = vmatpush1.msra.mxu0 0.0
        %291 = vmatprep.subr.mxu0 0.0
        %292 = vmatpush1.msra.mxu0 0.0
        %293 = vmatprep.subr.mxu0 0.0
        %294 = vmatpush1.msra.mxu0 0.0
        %295 = vmatprep.subr.mxu0 0.0
        %296 = vmatpush1.msra.mxu0 0.0
        %297 = vmatprep.subr.mxu0 0.0
        %298 = vmatpush1.msra.mxu0 0.0
        %299 = vmatprep.subr.mxu0 0.0
        %300 = vmatpush1.msra.mxu0 0.0
        %301 = vmatprep.subr.mxu0 0.0
        %302 = vmatpush1.msra.mxu0 0.0
        %303 = vmatprep.subr.mxu0 0.0
        %304 = vmatpush1.msra.mxu0 0.0
        %305 = vmatprep.subr.mxu0 0.0
        %306 = vmatpush1.msra.mxu0 0.0
        %307 = vmatprep.subr.mxu0 0.0
        %308 = vmatpush1.msra.mxu0 0.0
        %309 = vmatprep.subr.mxu0 0.0
        %310 = vmatpush1.msra.mxu0 0.0
        %311 = vmatprep.subr.mxu0 0.0
        %312 = vmatpush1.msra.mxu0 0.0
        %313 = vmatprep.subr.mxu0 0.0
        %314 = vmatpush1.msra.mxu0 0.0
        %315 = vmatprep.subr.mxu0 0.0
        %316 = vmatpush1.msra.mxu0 0.0
        %317 = vmatprep.subr.mxu0 0.0
        %318 = vmatpush1.msra.mxu0 0.0
        %319 = vmatprep.subr.mxu0 0.0
        %320 = vmatpush1.msra.mxu0 0.0
        %321 = vmatprep.subr.mxu0 0.0
        %322 = vmatpush1.msra.mxu0 0.0
        %323 = vmatprep.subr.mxu0 0.0
        %324 = vmatpush1.msra.mxu0 0.0
        %325 = vmatprep.subr.mxu0 0.0
        %326 = vmatpush1.msra.mxu0 0.0
        %327 = vmatprep.subr.mxu0 0.0
        %328 = vmatpush1.msra.mxu0 0.0
        %329 = vmatprep.subr.mxu0 0.0
        %330 = vmatpush1.msra.mxu0 0.0
        %331 = vmatprep.subr.mxu0 0.0
        %332 = vmatpush1.msra.mxu0 0.0
        %333 = vmatprep.subr.mxu0 0.0
        %334 = vmatpush1.msra.mxu0 0.0
        %335 = vmatprep.subr.mxu0 0.0
        %336 = vmatpush1.msra.mxu0 0.0
        %337 = vmatprep.subr.mxu0 0.0
        %338 = vmatpush1.msra.mxu0 0.0
        %339 = vmatprep.subr.mxu0 0.0
        %340 = vmatpush1.msra.mxu0 0.0
        %341 = vmatprep.subr.mxu0 0.0
        %342 = vmatpush1.msra.mxu0 0.0
        %343 = vmatprep.mubr.f32.mxu0 0.0
        %344 = vmatmul.mubr.f32.gmra.mrb[0].mxu0 %v273
        %v345 = vpop.f32.mrb[0].mxu0
        %v346 = vadd.f32 0.0, %v345
        %v347 = vpop.f32.mrb[0].mxu0
        %348 = vdwg.mxu0
        %v349 = vadd.f32 %v268, %v346
        %350 = vst [vmem:[#allocation2] sm:$0xff] %v349
        // Predicated region
        $region37: #{tpu_custom_call.1} parent=31 // pred_check
          %p351 = pneg %p263
        $region38: #{tpu_custom_call.1} parent=31 // pred_check_branch
          %353 = sbr.rel (%p351) target = $region40
        $region39: #{tpu_custom_call.1} parent=31 // pred_region
          %v354 = vld [vmem:[#allocation2] sm:$0xff]
          %v355 = vld [vmem:[%s262] sm:$0xff]
          %357 = vset.pattern.permute.xlu0 0
          %358 = vperm.xlu0 %357, %v355
          %v359 = vpop.permute.xlu0 %358
          %v361 = vadd.f32 %v354, %v359
          %v362 = vmul.f32 %v361, 0.5
          %v363 = vtanh.pop %v362
          %v364 = vmul.f32 %v363, 0.5
          %v365 = vadd.f32 %v364, 0.5
          %v366 = vmul.f32 %v361, %v365
          %367 = vst [vmem:[%s241] sm:$0xff] %v366
        $region40: #{tpu_custom_call.1} parent=31 // pred_fallthru
          _
        %s368 = sand.u32 %s139, 1
        %s369 = scalar_lea.sflag [#allocation4], %s368
        %s370 = sand.u32 %s139, 1
        %s371 = smul.addr %s370, 8
        %s372 = scalar_lea.vmem [#allocation3], %s371
        // Predicated region
        $region41: #{tpu_custom_call.1} parent=31 // pred_check
          %p373 = pneg %p149
        $region42: #{tpu_custom_call.1} parent=31 // pred_check_branch
          %375 = sbr.rel (%p373) target = $region44
        $region43: #{tpu_custom_call.1} parent=31 // pred_region
          %s377 = ssub.s32 128, 128
          %378 = vsyncadd %s369, %s377
          %s379 = sadd.s32 %s24, %s25
          %s380 = sadd.s32 %s379, %s23
          %s381 = smul.addr %s380, 128
          %s382 = scalar_lea.hbm %s3, %s381
          %s384 = sshll.u32 %s372, 4
          %s385 = int_to_ptr.vmem [resolvable:$true] %s384
          %387 = dma.vmem_to_hbm [thread:$0]  %s385, 128, %s382, %s369
        $region44: #{tpu_custom_call.1} parent=31 // pred_fallthru
          _
      $region32: #{tpu_custom_call.1} parent=5 // pred_fallthru
        _
      %p388 = scmp.le.s32.totalorder 2, %s12
      // Predicated region
      $region45: #{tpu_custom_call.1} parent=5 // pred_check
        %p389 = pneg %p388
      $region46: #{tpu_custom_call.1} parent=5 // pred_check_branch
        %391 = sbr.rel (%p389) target = $region48
      $region47: #{tpu_custom_call.1} parent=5 // pred_region
        %s392 = ssub.s32 %s12, 2
        // Predicated region
        $region49: #{tpu_custom_call.1} parent=47 // pred_check
          %p393 = pneg %p155
        $region50: #{tpu_custom_call.1} parent=47 // pred_check_branch
          %395 = sbr.rel (%p393) target = $region52
        $region51: #{tpu_custom_call.1} parent=47 // pred_region
          %s396 = sand.u32 %s140, 1
          %s397 = scalar_lea.sflag [#allocation4], %s396
          %s398 = sand.u32 %s140, 1
          %s399 = smul.addr %s398, 8
          %s400 = scalar_lea.vmem [#allocation3], %s399
          %401 = dma.done %s397, 128
        $region52: #{tpu_custom_call.1} parent=47 // pred_fallthru
          _
      $region48: #{tpu_custom_call.1} parent=5 // pred_fallthru
        _
    $region6: #{tpu_custom_call.1} parent=1 // loop_footer
      %s16 = sadd.s32 1, %s12
    $region7: #{tpu_custom_call.1} parent=1 // loop_footer_branch
      %11 = sbr.rel target = $region3
    $region8: #{tpu_custom_call.1} parent=1 // loop_exit
      _
    %402 = vsyncpa [#allocation4], 1
    %s403 = scalar_lea.sflag [#allocation4], 1
    %404 = vsyncpa %s403, 1

</llo_original>
